<compile_context>
chip_gen: v5e
topology: v5e:2x2
jax: 0.10.0
libtpu: 0.0.40
codegen_flags: <defaults>
</compile_context>

<pallas_src>
import functools
import numpy as np
import jax
import jax.numpy as jnp
from jax.experimental import pallas as pl
from jax.experimental.pallas import tpu as pltpu

# ------------------------------ SMPL skeleton ---------------------------------
SMPL_PARENTS = (-1, 0, 0, 0, 1, 2, 3, 4, 5, 6, 7, 8,
                9, 9, 9, 12, 13, 14, 16, 17, 18, 19, 20, 21)
SMPL_ROOT_ID = 0
N_JOINTS = 24


def _compute_levels():
    depth = [0] * N_JOINTS
    for j in range(1, N_JOINTS):
        depth[j] = depth[SMPL_PARENTS[j]] + 1
    levels = []
    for d in range(1, max(depth) + 1):
        levels.append(tuple(j for j in range(1, N_JOINTS) if depth[j] == d))
    return tuple(levels)


SMPL_LEVELS = _compute_levels()      # 8 tree levels instead of 23 serial steps

# ------------------------------ hyper-params -----------------------------------
EMB_DIM = 16
DEPTH = 4                            # number of Linear layers (module default)
WIDTH = 128
RESIDUAL_SCALE = 0.1
RVEC_DIM = 3 * N_JOINTS              # rot_6d=False
IN_DIM = RVEC_DIM + EMB_DIM          # 88
OUT_DIM = RVEC_DIM + 3               # 75
LANE = 128                           # lane-dense padded feature width


def _round_up(x, m):
    return (x + m - 1) // m * m


# ------------------------------ Pallas MLP kernel ------------------------------
def _refine_net_kernel(x_ref, w_ref, b_ref, o_ref):
    # x_ref: (TM, 128) bf16 ; w_ref: (4, 128, 128) bf16 ; b_ref: (4, 1, 128) f32
    h = jnp.dot(x_ref[...], w_ref[0], preferred_element_type=jnp.float32) + b_ref[0]
    h = jnp.maximum(h, 0.0).astype(jnp.bfloat16)
    h = jnp.dot(h, w_ref[1], preferred_element_type=jnp.float32) + b_ref[1]
    h = jnp.maximum(h, 0.0).astype(jnp.bfloat16)
    h = jnp.dot(h, w_ref[2], preferred_element_type=jnp.float32) + b_ref[2]
    h = jnp.maximum(h, 0.0).astype(jnp.bfloat16)
    o_ref[...] = jnp.dot(h, w_ref[3], preferred_element_type=jnp.float32) + b_ref[3]


def refine_net_pallas(x, w_slab, b_slab):
    """x: (B, IN_DIM) -> (B, OUT_DIM) f32 via the 4-layer refine_net MLP."""
    b = x.shape[0]
    tm = min(128, _round_up(b, 8))           # 8-row min (sublane), 128-row max (MXU M)
    b_pad = _round_up(b, tm)
    grid = b_pad // tm

    # lane-dense activation slab: pad features 88 -> 128, rows b -> b_pad
    x_p = jnp.zeros((b_pad, LANE), jnp.bfloat16)
    x_p = x_p.at[:b, :IN_DIM].set(x.astype(jnp.bfloat16))

    flops = 2 * b_pad * LANE * LANE * DEPTH
    bytes_accessed = (b_pad * LANE * 2            # x (bf16)
                      + DEPTH * LANE * LANE * 2   # weight slab (bf16)
                      + DEPTH * LANE * 4          # bias slab (f32)
                      + b_pad * LANE * 4)         # output (f32)

    out = pl.pallas_call(
        _refine_net_kernel,
        out_shape=jax.ShapeDtypeStruct((b_pad, LANE), jnp.float32),
        grid=(grid,),
        in_specs=[
            pl.BlockSpec((tm, LANE), lambda i: (i, 0)),
            pl.BlockSpec((DEPTH, LANE, LANE), lambda i: (0, 0, 0)),
            pl.BlockSpec((DEPTH, 1, LANE), lambda i: (0, 0, 0)),
        ],
        out_specs=pl.BlockSpec((tm, LANE), lambda i: (i, 0)),
        compiler_params=pltpu.CompilerParams(
            dimension_semantics=("parallel",),
            vmem_limit_bytes=32 * 1024 * 1024),
        cost_estimate=pl.CostEstimate(flops=flops, transcendentals=0,
                                      bytes_accessed=bytes_accessed),
    )(x_p, w_slab, b_slab)
    return out[:b, :OUT_DIM]


def pack_refine_net(w0, b0, w1, b1, w2, b2, w3, b3):
    """Pack the 4 Linear layers into one bf16 weight slab + one f32 bias slab."""
    w = jnp.zeros((DEPTH, LANE, LANE), jnp.float32)
    w = w.at[0, :IN_DIM, :].set(w0)
    w = w.at[1].set(w1)
    w = w.at[2].set(w2)
    w = w.at[3, :, :OUT_DIM].set(w3)
    b = jnp.zeros((DEPTH, 1, LANE), jnp.float32)
    b = b.at[0, 0, :].set(b0)
    b = b.at[1, 0, :].set(b1)
    b = b.at[2, 0, :].set(b2)
    b = b.at[3, 0, :OUT_DIM].set(b3)
    return w.astype(jnp.bfloat16), b


def refine_net_ref(x, params):
    """Pure-JAX f32 reference of the MLP (for correctness check only)."""
    h = jnp.maximum(x @ params["w0"] + params["b0"], 0.0)
    h = jnp.maximum(h @ params["w1"] + params["b1"], 0.0)
    h = jnp.maximum(h @ params["w2"] + params["b2"], 0.0)
    return h @ params["w3"] + params["b3"]


# ------------------------------ kinematics (glue) -------------------------------
# TODO(synk): embedding gather + per-level kinematic traversal stay in plain JAX
# (tiny, data-dependent, tree-structured work with no clean Pallas tiling).
def rodrigues(rvec):
    """Axis-angle (..., 3) -> rotation matrix (..., 3, 3)."""
    theta = jnp.linalg.norm(rvec, axis=-1, keepdims=True)
    small = theta < 1e-8
    safe_theta = jnp.where(small, 1.0, theta)
    k = rvec / safe_theta
    kx, ky, kz = k[..., 0], k[..., 1], k[..., 2]
    zero = jnp.zeros_like(kx)
    K = jnp.stack([
        jnp.stack([zero, -kz, ky], -1),
        jnp.stack([kz, zero, -kx], -1),
        jnp.stack([-ky, kx, zero], -1)], -2)
    eye = jnp.eye(3, dtype=rvec.dtype)
    s = jnp.sin(theta)[..., None]
    c = jnp.cos(theta)[..., None]
    R = eye + s * K + (1.0 - c) * (K @ K)
    return jnp.where(small[..., None], eye, R)


def calculate_kinematic(rest_pose, rvecs, root_locs):
    """rest_pose (J,3), rvecs (B,J,3), root_locs (B,3) -> kp (B,J,3), skts (B,J,4,4)."""
    B, J, _ = rvecs.shape
    dtype = rvecs.dtype
    R = rodrigues(rvecs)                                        # (B, J, 3, 3)

    parent_np = np.asarray(SMPL_PARENTS)
    child_t = rest_pose[1:] - rest_pose[parent_np[1:]]          # (J-1, 3)
    trans = jnp.zeros((B, J, 3), dtype)
    trans = trans.at[:, 0].set(root_locs)
    trans = trans.at[:, 1:].set(jnp.broadcast_to(child_t, (B, J - 1, 3)))

    # local 4x4 transforms, built vectorized in one shot
    T = jnp.zeros((B, J, 4, 4), dtype)
    T = T.at[..., :3, :3].set(R).at[..., :3, 3].set(trans).at[..., 3, 3].set(1.0)

    # level-parallel chain: all joints on a tree level share already-final parents
    l2w = T                                                     # root is already world
    for lvl in SMPL_LEVELS:
        lvl_idx = np.asarray(lvl)
        par_idx = parent_np[lvl_idx]
        new = jnp.einsum('bjkl,bjlm->bjkm', l2w[:, par_idx], T[:, lvl_idx])
        l2w = l2w.at[:, lvl_idx].set(new)

    kp = l2w[..., :3, 3]
    Rw = l2w[..., :3, :3]
    Rinv = jnp.swapaxes(Rw, -1, -2)
    tinv = -jnp.einsum('bjkl,bjl->bjk', Rinv, kp)
    skts = jnp.zeros_like(l2w)
    skts = skts.at[..., :3, :3].set(Rinv).at[..., :3, 3].set(tinv).at[..., 3, 3].set(1.0)
    return kp, skts


# ------------------------------ PoseOpt forward ---------------------------------
def _pose_opt_core(params, buffers, kp3d, bones, kp_idxs, N_unique, refine_fn):
    N_samples = kp3d.shape[0]
    skip = N_samples // N_unique
    N, J, D = bones.shape

    rvecs = bones[::skip].reshape(-1, J * D)                    # (Nu, J*D)
    kp_unique = kp_idxs[::skip]
    embs = params["pose_embs"][kp_unique]                       # (Nu, emb_dim)
    pelvis = buffers["pelvis"][kp_unique]                       # (Nu, 3)

    x = jnp.concatenate([rvecs, embs], axis=-1)                 # (Nu, IN_DIM)
    residual = refine_fn(x, params) * RESIDUAL_SCALE
    residual_rvecs = residual[:, :J * D]
    residual_pelvis = residual[:, J * D:]

    rvecs = (rvecs + residual_rvecs).reshape(-1, J, D)
    pelvis = pelvis + residual_pelvis

    kp, skts = calculate_kinematic(buffers["rest_pose"], rvecs, pelvis)

    # expand unique poses back to all samples: '(i s) ...'
    kp = jnp.repeat(kp, skip, axis=0)
    skts = jnp.repeat(skts, skip, axis=0)
    rvecs_out = jnp.repeat(rvecs, skip, axis=0)
    return kp, skts, rvecs_out


@functools.partial(jax.jit, static_argnames=("N_unique",))
def pose_opt_forward(params, buffers, network_inputs, kp3d, bones, kp_idxs, N_unique=1):
    kp, skts, rvecs = _pose_opt_core(
        params, buffers, kp3d, bones, kp_idxs, N_unique,
        lambda x, p: refine_net_pallas(x, p["w_slab"], p["b_slab"]))
    out = dict(network_inputs)
    out.update(kp3d=kp, skts=skts, bones=rvecs)
    return out


@functools.partial(jax.jit, static_argnames=("N_unique",))
def pose_opt_forward_ref(params, buffers, kp3d, bones, kp_idxs, N_unique=1):
    kp, skts, rvecs = _pose_opt_core(
        params, buffers, kp3d, bones, kp_idxs, N_unique, refine_net_ref)
    return kp, skts, rvecs


# ------------------------------ parameter init ----------------------------------
def init_params_and_buffers(key, n_embs):
    ks = jax.random.split(key, 12)

    def lin_w(kw, fan_in, fan_out):
        bound = 1.0 / np.sqrt(fan_in)
        return jax.random.uniform(kw, (fan_in, fan_out), jnp.float32, -bound, bound)

    def lin_b(kb, fan_in, fan_out):
        bound = 1.0 / np.sqrt(fan_in)
        return jax.random.uniform(kb, (fan_out,), jnp.float32, -bound, bound)

    w0 = lin_w(ks[1], IN_DIM, WIDTH);  b0 = lin_b(ks[2], IN_DIM, WIDTH)
    w1 = lin_w(ks[3], WIDTH, WIDTH);   b1 = lin_b(ks[4], WIDTH, WIDTH)
    w2 = lin_w(ks[5], WIDTH, WIDTH);   b2 = lin_b(ks[6], WIDTH, WIDTH)
    w3 = lin_w(ks[7], WIDTH, OUT_DIM); b3 = lin_b(ks[8], WIDTH, OUT_DIM)
    w_slab, b_slab = pack_refine_net(w0, b0, w1, b1, w2, b2, w3, b3)

    params = {
        "pose_embs": jax.random.normal(ks[0], (n_embs, EMB_DIM), jnp.float32),
        "w0": w0, "b0": b0, "w1": w1, "b1": b1,
        "w2": w2, "b2": b2, "w3": w3, "b3": b3,
        "w_slab": w_slab, "b_slab": b_slab,
    }
    rest_pose = 0.3 * jax.random.normal(ks[9], (N_JOINTS, 3), jnp.float32)
    kp3d_data = 0.3 * jax.random.normal(ks[10], (n_embs, N_JOINTS, 3), jnp.float32)
    bones_data = 0.2 * jax.random.normal(ks[11], (n_embs, N_JOINTS, 3), jnp.float32)
    buffers = {
        "rest_pose": rest_pose,
        "pelvis": kp3d_data[:, SMPL_ROOT_ID],          # pelvis == root joint of kp3d
        "rvecs": bones_data,
    }
    return params, buffers, kp3d_data, bones_data


# ------------------------------ main ---------------------------------------------
if __name__ == "__main__":
    key = jax.random.PRNGKey(0)
    n_embs = 3
    B, N_unique = 4, 2                                  # skip = 2
    params, buffers, kp3d_data, bones_data = init_params_and_buffers(key, n_embs)

    kp_idxs = jnp.array([0, 0, 1, 1], dtype=jnp.int32)
    kp3d = kp3d_data[kp_idxs]                           # (4, 24, 3)
    bones = bones_data[kp_idxs]                         # (4, 24, 3)

    # same check as the module's assertion: pelvis buffer == root joint of kp3d
    skip = B // N_unique
    assert np.allclose(np.asarray(buffers["pelvis"][kp_idxs[::skip]]),
                       np.asarray(kp3d[::skip, SMPL_ROOT_ID]), atol=1e-5), \
        "Pelvis should be the same as root joint"

    out = pose_opt_forward(params, buffers, {}, kp3d, bones, kp_idxs, N_unique=N_unique)
    jax.block_until_ready(out)

    assert out["kp3d"].shape == (B, N_JOINTS, 3)
    assert out["skts"].shape == (B, N_JOINTS, 4, 4)
    assert out["bones"].shape == (B, N_JOINTS, 3)
    assert np.all(np.isfinite(np.asarray(out["kp3d"])))
    assert np.all(np.isfinite(np.asarray(out["skts"])))

    # pure-JAX f32 reference (Pallas MLP runs bf16 operands -> loose tolerance)
    kp_ref, skts_ref, rvecs_ref = pose_opt_forward_ref(
        params, buffers, kp3d, bones, kp_idxs, N_unique=N_unique)
    assert np.allclose(np.asarray(out["kp3d"]), np.asarray(kp_ref), atol=3e-2)
    assert np.allclose(np.asarray(out["skts"]), np.asarray(skts_ref), atol=3e-2)
    assert np.allclose(np.asarray(out["bones"]), np.asarray(rvecs_ref), atol=3e-2)

    print("KERNEL_OK")
</pallas_src>

<mosaic_0001>
module attributes {stable_mosaic.version = 11 : i64} {
  func.func @_refine_net_kernel(%arg0: i32, %arg1: memref<8x128xbf16, #tpu.memory_space<vmem>>, %arg2: memref<4x128x128xbf16, #tpu.memory_space<vmem>>, %arg3: memref<4x1x128xf32, #tpu.memory_space<vmem>>, %arg4: memref<8x128xf32, #tpu.memory_space<vmem>>) attributes {dimension_semantics = [#tpu.dimension_semantics<parallel>], iteration_bounds = array<i64: 1>, scalar_prefetch = 0 : i64, scratch_operands = 0 : i64, tpu.core_type = #tpu.core_type<tc>, window_params = [{transform_indices = @transform_0, window_bounds = array<i64: 8, 128>}, {pipeline_mode = #tpu.pipeline_mode<synchronous>, transform_indices = @transform_1, window_bounds = array<i64: 4, 128, 128>}, {pipeline_mode = #tpu.pipeline_mode<synchronous>, transform_indices = @transform_2, window_bounds = array<i64: 4, 1, 128>}, {transform_indices = @transform_3, window_bounds = array<i64: 8, 128>}]} {
    %c0 = arith.constant 0 : index
    %c0_0 = arith.constant 0 : index
    %0 = vector.load %arg1[%c0, %c0_0] : memref<8x128xbf16, #tpu.memory_space<vmem>>, vector<8x128xbf16>
    %c0_1 = arith.constant 0 : index
    %c0_2 = arith.constant 0 : index
    %c0_3 = arith.constant 0 : index
    %1 = vector.load %arg2[%c0_1, %c0_2, %c0_3] : memref<4x128x128xbf16, #tpu.memory_space<vmem>>, vector<1x128x128xbf16>
    %2 = vector.shape_cast %1 : vector<1x128x128xbf16> to vector<128x128xbf16>
    %cst = arith.constant dense<0.000000e+00> : vector<8x128xf32>
    %3 = tpu.matmul %0, %2, %cst {dimension_numbers = #tpu.dot_dimension_numbers<[1], [0], [0], [1], [0, 0, 1, 1], [], []>} : vector<8x128xbf16>, vector<128x128xbf16>, vector<8x128xf32> -> vector<8x128xf32>
    %c0_4 = arith.constant 0 : index
    %c0_5 = arith.constant 0 : index
    %c0_6 = arith.constant 0 : index
    %4 = vector.load %arg3[%c0_4, %c0_5, %c0_6] : memref<4x1x128xf32, #tpu.memory_space<vmem>>, vector<1x1x128xf32>
    %5 = vector.shape_cast %4 : vector<1x1x128xf32> to vector<1x128xf32>
    %6 = vector.broadcast %5 : vector<1x128xf32> to vector<8x128xf32>
    %7 = arith.addf %3, %6 : vector<8x128xf32>
    %cst_7 = arith.constant 0.000000e+00 : f32
    %8 = vector.broadcast %cst_7 : f32 to vector<8x128xf32>
    %9 = arith.maximumf %7, %8 : vector<8x128xf32>
    %10 = arith.truncf %9 : vector<8x128xf32> to vector<8x128xbf16>
    %c1 = arith.constant 1 : index
    %c0_8 = arith.constant 0 : index
    %c0_9 = arith.constant 0 : index
    %11 = vector.load %arg2[%c1, %c0_8, %c0_9] : memref<4x128x128xbf16, #tpu.memory_space<vmem>>, vector<1x128x128xbf16>
    %12 = vector.shape_cast %11 : vector<1x128x128xbf16> to vector<128x128xbf16>
    %cst_10 = arith.constant dense<0.000000e+00> : vector<8x128xf32>
    %13 = tpu.matmul %10, %12, %cst_10 {dimension_numbers = #tpu.dot_dimension_numbers<[1], [0], [0], [1], [0, 0, 1, 1], [], []>} : vector<8x128xbf16>, vector<128x128xbf16>, vector<8x128xf32> -> vector<8x128xf32>
    %c1_11 = arith.constant 1 : index
    %c0_12 = arith.constant 0 : index
    %c0_13 = arith.constant 0 : index
    %14 = vector.load %arg3[%c1_11, %c0_12, %c0_13] : memref<4x1x128xf32, #tpu.memory_space<vmem>>, vector<1x1x128xf32>
    %15 = vector.shape_cast %14 : vector<1x1x128xf32> to vector<1x128xf32>
    %16 = vector.broadcast %15 : vector<1x128xf32> to vector<8x128xf32>
    %17 = arith.addf %13, %16 : vector<8x128xf32>
    %cst_14 = arith.constant 0.000000e+00 : f32
    %18 = vector.broadcast %cst_14 : f32 to vector<8x128xf32>
    %19 = arith.maximumf %17, %18 : vector<8x128xf32>
    %20 = arith.truncf %19 : vector<8x128xf32> to vector<8x128xbf16>
    %c2 = arith.constant 2 : index
    %c0_15 = arith.constant 0 : index
    %c0_16 = arith.constant 0 : index
    %21 = vector.load %arg2[%c2, %c0_15, %c0_16] : memref<4x128x128xbf16, #tpu.memory_space<vmem>>, vector<1x128x128xbf16>
    %22 = vector.shape_cast %21 : vector<1x128x128xbf16> to vector<128x128xbf16>
    %cst_17 = arith.constant dense<0.000000e+00> : vector<8x128xf32>
    %23 = tpu.matmul %20, %22, %cst_17 {dimension_numbers = #tpu.dot_dimension_numbers<[1], [0], [0], [1], [0, 0, 1, 1], [], []>} : vector<8x128xbf16>, vector<128x128xbf16>, vector<8x128xf32> -> vector<8x128xf32>
    %c2_18 = arith.constant 2 : index
    %c0_19 = arith.constant 0 : index
    %c0_20 = arith.constant 0 : index
    %24 = vector.load %arg3[%c2_18, %c0_19, %c0_20] : memref<4x1x128xf32, #tpu.memory_space<vmem>>, vector<1x1x128xf32>
    %25 = vector.shape_cast %24 : vector<1x1x128xf32> to vector<1x128xf32>
    %26 = vector.broadcast %25 : vector<1x128xf32> to vector<8x128xf32>
    %27 = arith.addf %23, %26 : vector<8x128xf32>
    %cst_21 = arith.constant 0.000000e+00 : f32
    %28 = vector.broadcast %cst_21 : f32 to vector<8x128xf32>
    %29 = arith.maximumf %27, %28 : vector<8x128xf32>
    %30 = arith.truncf %29 : vector<8x128xf32> to vector<8x128xbf16>
    %c3 = arith.constant 3 : index
    %c0_22 = arith.constant 0 : index
    %c0_23 = arith.constant 0 : index
    %31 = vector.load %arg2[%c3, %c0_22, %c0_23] : memref<4x128x128xbf16, #tpu.memory_space<vmem>>, vector<1x128x128xbf16>
    %32 = vector.shape_cast %31 : vector<1x128x128xbf16> to vector<128x128xbf16>
    %cst_24 = arith.constant dense<0.000000e+00> : vector<8x128xf32>
    %33 = tpu.matmul %30, %32, %cst_24 {dimension_numbers = #tpu.dot_dimension_numbers<[1], [0], [0], [1], [0, 0, 1, 1], [], []>} : vector<8x128xbf16>, vector<128x128xbf16>, vector<8x128xf32> -> vector<8x128xf32>
    %c3_25 = arith.constant 3 : index
    %c0_26 = arith.constant 0 : index
    %c0_27 = arith.constant 0 : index
    %34 = vector.load %arg3[%c3_25, %c0_26, %c0_27] : memref<4x1x128xf32, #tpu.memory_space<vmem>>, vector<1x1x128xf32>
    %35 = vector.shape_cast %34 : vector<1x1x128xf32> to vector<1x128xf32>
    %36 = vector.broadcast %35 : vector<1x128xf32> to vector<8x128xf32>
    %37 = arith.addf %33, %36 : vector<8x128xf32>
    %c0_28 = arith.constant 0 : index
    %c0_29 = arith.constant 0 : index
    %38 = vector.load %arg4[%c0_28, %c0_29] : memref<8x128xf32, #tpu.memory_space<vmem>>, vector<8x128xf32>
    tpu.vector_store %arg4[%c0_28, %c0_29], %37 {strides = array<i32>} : memref<8x128xf32, #tpu.memory_space<vmem>>, vector<8x128xf32>,
    return
  }
  func.func @transform_0(%arg0: i32) -> (i32, i32) {
    %c0_i32 = arith.constant 0 : i32
    %c0_i32_0 = arith.constant 0 : i32
    return %arg0, %c0_i32 : i32, i32
  }
  func.func @transform_1(%arg0: i32) -> (i32, i32, i32) {
    %c0_i32 = arith.constant 0 : i32
    %c0_i32_0 = arith.constant 0 : i32
    %c0_i32_1 = arith.constant 0 : i32
    %c0_i32_2 = arith.constant 0 : i32
    return %c0_i32, %c0_i32_0, %c0_i32_1 : i32, i32, i32
  }
  func.func @transform_2(%arg0: i32) -> (i32, i32, i32) {
    %c0_i32 = arith.constant 0 : i32
    %c0_i32_0 = arith.constant 0 : i32
    %c0_i32_1 = arith.constant 0 : i32
    %c0_i32_2 = arith.constant 0 : i32
    return %c0_i32, %c0_i32_0, %c0_i32_1 : i32, i32, i32
  }
  func.func @transform_3(%arg0: i32) -> (i32, i32) {
    %c0_i32 = arith.constant 0 : i32
    %c0_i32_0 = arith.constant 0 : i32
    return %arg0, %c0_i32 : i32, i32
  }
}

</mosaic_0001>

<llo_original>
// kernel: sub.5
$region0: #{sub.5}
  #allocation0 [shape = 's32[1]{0}', space=sflag, size = 0x4, scoped, tag = 'scoped memory for sub.5']
  %s0 = inlined_call_operand.vmem [shape: f32[23,3], index: 0, kind: input, shape index: {}]
  %s1 = inlined_call_operand.vmem [shape: f32[23,3], index: 1, kind: input, shape index: {}]
  %s2 = inlined_call_operand.vmem [shape: f32[23,3], index: 2, kind: output, shape index: {}]
  %v3 = vld [vmem:[%s0] sm:$0xff]
  %v4 = vld [vmem:[%s1] sm:$0xff]
  %5 = xla_tuple %v3, %v4
  %6 = xla_tuple %5
  %v7 = vsub.f32 %v3, %v4
  %8 = xla_tuple %v7
  %9 = vst [vmem:[%s2] sm:$0xff] %v7
  %s10 = scalar_lea.vmem %s0, 8
  %v11 = vld [vmem:[%s10] sm:$0xff]
  %s12 = scalar_lea.vmem %s1, 8
  %v13 = vld [vmem:[%s12] sm:$0xff]
  %14 = xla_tuple %v11, %v13
  %15 = xla_tuple %14
  %v16 = vsub.f32 %v11, %v13
  %17 = xla_tuple %v16
  %s18 = scalar_lea.vmem %s2, 8
  %19 = vst [vmem:[%s18] sm:$0xff] %v16
  %s20 = scalar_lea.vmem %s0, 16
  %v21 = vld [vmem:[%s20] sm:$0xff]
  %s22 = scalar_lea.vmem %s1, 16
  %v23 = vld [vmem:[%s22] sm:$0xff]
  %24 = xla_tuple %v21, %v23
  %25 = xla_tuple %24
  %v26 = vsub.f32 %v21, %v23
  %27 = xla_tuple %v26
  %s28 = scalar_lea.vmem %s2, 16
  %29 = vst [vmem:[%s28] sm:$0xff] %v26

// kernel: sub.3
$region0: #{sub.3}
  #allocation0 [shape = 's32[1]{0}', space=sflag, size = 0x4, scoped, tag = 'scoped memory for sub.3']
  %s0 = inlined_call_operand.<no memory space> [shape: f32[], index: 0, kind: input, shape index: {}]
  %s1 = inlined_call_operand.vmem [shape: f32[2,24,1,1], index: 1, kind: output, shape index: {}]
  %v2 = vstv %s0
  %3 = vst [vmem:[%s1] sm:$0x1] %v2
  %s4 = scalar_lea.vmem %s1, 24
  %5 = vst [vmem:[%s4] sm:$0x1] %v2
  %s6 = scalar_lea.vmem %s1, 1
  %7 = vst [vmem:[%s6] sm:$0x1] %v2
  %s8 = scalar_lea.vmem %s1, 25
  %9 = vst [vmem:[%s8] sm:$0x1] %v2
  %s10 = scalar_lea.vmem %s1, 2
  %11 = vst [vmem:[%s10] sm:$0x1] %v2
  %s12 = scalar_lea.vmem %s1, 26
  %13 = vst [vmem:[%s12] sm:$0x1] %v2
  %s14 = scalar_lea.vmem %s1, 3
  %15 = vst [vmem:[%s14] sm:$0x1] %v2
  %s16 = scalar_lea.vmem %s1, 27
  %17 = vst [vmem:[%s16] sm:$0x1] %v2
  %s18 = scalar_lea.vmem %s1, 4
  %19 = vst [vmem:[%s18] sm:$0x1] %v2
  %s20 = scalar_lea.vmem %s1, 28
  %21 = vst [vmem:[%s20] sm:$0x1] %v2
  %s22 = scalar_lea.vmem %s1, 5
  %23 = vst [vmem:[%s22] sm:$0x1] %v2
  %s24 = scalar_lea.vmem %s1, 29
  %25 = vst [vmem:[%s24] sm:$0x1] %v2
  %s26 = scalar_lea.vmem %s1, 6
  %27 = vst [vmem:[%s26] sm:$0x1] %v2
  %s28 = scalar_lea.vmem %s1, 30
  %29 = vst [vmem:[%s28] sm:$0x1] %v2
  %s30 = scalar_lea.vmem %s1, 7
  %31 = vst [vmem:[%s30] sm:$0x1] %v2
  %s32 = scalar_lea.vmem %s1, 31
  %33 = vst [vmem:[%s32] sm:$0x1] %v2
  %s34 = scalar_lea.vmem %s1, 8
  %35 = vst [vmem:[%s34] sm:$0x1] %v2
  %s36 = scalar_lea.vmem %s1, 32
  %37 = vst [vmem:[%s36] sm:$0x1] %v2
  %s38 = scalar_lea.vmem %s1, 9
  %39 = vst [vmem:[%s38] sm:$0x1] %v2
  %s40 = scalar_lea.vmem %s1, 33
  %41 = vst [vmem:[%s40] sm:$0x1] %v2
  %s42 = scalar_lea.vmem %s1, 10
  %43 = vst [vmem:[%s42] sm:$0x1] %v2
  %s44 = scalar_lea.vmem %s1, 34
  %45 = vst [vmem:[%s44] sm:$0x1] %v2
  %s46 = scalar_lea.vmem %s1, 11
  %47 = vst [vmem:[%s46] sm:$0x1] %v2
  %s48 = scalar_lea.vmem %s1, 35
  %49 = vst [vmem:[%s48] sm:$0x1] %v2
  %s50 = scalar_lea.vmem %s1, 12
  %51 = vst [vmem:[%s50] sm:$0x1] %v2
  %s52 = scalar_lea.vmem %s1, 36
  %53 = vst [vmem:[%s52] sm:$0x1] %v2
  %s54 = scalar_lea.vmem %s1, 13
  %55 = vst [vmem:[%s54] sm:$0x1] %v2
  %s56 = scalar_lea.vmem %s1, 37
  %57 = vst [vmem:[%s56] sm:$0x1] %v2
  %s58 = scalar_lea.vmem %s1, 14
  %59 = vst [vmem:[%s58] sm:$0x1] %v2
  %s60 = scalar_lea.vmem %s1, 38
  %61 = vst [vmem:[%s60] sm:$0x1] %v2
  %s62 = scalar_lea.vmem %s1, 15
  %63 = vst [vmem:[%s62] sm:$0x1] %v2
  %s64 = scalar_lea.vmem %s1, 39
  %65 = vst [vmem:[%s64] sm:$0x1] %v2
  %s66 = scalar_lea.vmem %s1, 16
  %67 = vst [vmem:[%s66] sm:$0x1] %v2
  %s68 = scalar_lea.vmem %s1, 40
  %69 = vst [vmem:[%s68] sm:$0x1] %v2
  %s70 = scalar_lea.vmem %s1, 17
  %71 = vst [vmem:[%s70] sm:$0x1] %v2
  %s72 = scalar_lea.vmem %s1, 41
  %73 = vst [vmem:[%s72] sm:$0x1] %v2
  %s74 = scalar_lea.vmem %s1, 18
  %75 = vst [vmem:[%s74] sm:$0x1] %v2
  %s76 = scalar_lea.vmem %s1, 42
  %77 = vst [vmem:[%s76] sm:$0x1] %v2
  %s78 = scalar_lea.vmem %s1, 19
  %79 = vst [vmem:[%s78] sm:$0x1] %v2
  %s80 = scalar_lea.vmem %s1, 43
  %81 = vst [vmem:[%s80] sm:$0x1] %v2
  %s82 = scalar_lea.vmem %s1, 20
  %83 = vst [vmem:[%s82] sm:$0x1] %v2
  %s84 = scalar_lea.vmem %s1, 44
  %85 = vst [vmem:[%s84] sm:$0x1] %v2
  %s86 = scalar_lea.vmem %s1, 21
  %87 = vst [vmem:[%s86] sm:$0x1] %v2
  %s88 = scalar_lea.vmem %s1, 45
  %89 = vst [vmem:[%s88] sm:$0x1] %v2
  %s90 = scalar_lea.vmem %s1, 22
  %91 = vst [vmem:[%s90] sm:$0x1] %v2
  %s92 = scalar_lea.vmem %s1, 46
  %93 = vst [vmem:[%s92] sm:$0x1] %v2
  %s94 = scalar_lea.vmem %s1, 23
  %95 = vst [vmem:[%s94] sm:$0x1] %v2
  %s96 = scalar_lea.vmem %s1, 47
  %97 = vst [vmem:[%s96] sm:$0x1] %v2

// kernel: pose_opt_forward.1
$region0: #{pose_opt_forward.1}
  #allocation0 [shape = 'u32[]', space=smem, size = 0x4, offset = 0x4, fixed_abs, tag = 'smem constant byte address 0x4 - core index']
  #allocation1 [shape = 'u32[72,128]{1,0:T(1,128)}', space=vmem, size = 0x9000, scoped, tag = 'internal scratch']
  %s0 = inlined_call_operand.vmem [shape: bf16[8,128], index: 0, kind: input, shape index: {}]
  %s1 = inlined_call_operand.hbm [shape: bf16[4,128,128], index: 1, kind: input, shape index: {}]
  %s2 = inlined_call_operand.vmem [shape: f32[4,1,128], index: 2, kind: input, shape index: {}]
  %s3 = inlined_call_operand.vmem [shape: f32[8,128], index: 3, kind: output, shape index: {}]
  %s4 = sld [smem:[#allocation0]]
  $region26: #{pose_opt_forward.1} parent=0
    _
  %s6 = ssub.s32 1, %s4
  %s7 = scalar_select 0, %s6, %s4
  $region1: #{pose_opt_forward.1} parent=0
    #allocation2 [shape = 'u8[131072]{0}', space=vmem, size = 0x20000, scoped, tag = 'input window, operand 1, single buffered']
    #allocation3 [shape = 's32[1]{0}', space=sflag, size = 0x4, scoped, tag = 'scoped memory for pose_opt_forward.1']
    %8 = vsyncpa [#allocation3], 0
    // Predicated region
    $region2: #{pose_opt_forward.1} parent=1 // pred_check
      _
    $region3: #{pose_opt_forward.1} parent=1 // pred_check_branch
      %10 = sbr.rel (0) target = $region5
    $region4: #{pose_opt_forward.1} parent=1 // pred_region
      _
    $region5: #{pose_opt_forward.1} parent=1 // pred_fallthru
      _
    // Predicated region
    $region6: #{pose_opt_forward.1} parent=1 // pred_check
      _
    $region7: #{pose_opt_forward.1} parent=1 // pred_check_branch
      %12 = sbr.rel (0) target = $region9
    $region8: #{pose_opt_forward.1} parent=1 // pred_region
      %14 = vsyncadd [#allocation3], 0
      %s15 = sshll.u32 %s1, 4
      %s16 = int_to_ptr.hbm [resolvable:$true] %s15
      %s17 = sshll.u32 [#allocation2], 4
      %s18 = int_to_ptr.vmem [resolvable:$true] %s17
      %23 = dma.hbm_to_vmem [thread:$0]  %s16, 4096, %s18, [#allocation3], 64, 64, 4
    $region9: #{pose_opt_forward.1} parent=1 // pred_fallthru
      _
    // Predicated region
    $region10: #{pose_opt_forward.1} parent=1 // pred_check
      _
    $region11: #{pose_opt_forward.1} parent=1 // pred_check_branch
      %25 = sbr.rel (0) target = $region13
    $region12: #{pose_opt_forward.1} parent=1 // pred_region
      _
    $region13: #{pose_opt_forward.1} parent=1 // pred_fallthru
      _
    // Predicated region
    $region14: #{pose_opt_forward.1} parent=1 // pred_check
      _
    $region15: #{pose_opt_forward.1} parent=1 // pred_check_branch
      %27 = sbr.rel (0) target = $region17
    $region16: #{pose_opt_forward.1} parent=1 // pred_region
      %29 = dma.done [#allocation3], 4096
    $region17: #{pose_opt_forward.1} parent=1 // pred_fallthru
      _
    %v30 = vld [vmem:[%s0] sm:$0xf]
    %v31 = vld [vmem:[#allocation2] sm:$0xf]
    %v32 = vld [vmem:[#allocation2 + $0x4] sm:$0xf]
    %v33 = vld [vmem:[#allocation2 + $0x8] sm:$0xf]
    %v34 = vld [vmem:[#allocation2 + $0xc] sm:$0xf]
    %v35 = vld [vmem:[#allocation2 + $0x10] sm:$0xf]
    %v36 = vld [vmem:[#allocation2 + $0x14] sm:$0xf]
    %v37 = vld [vmem:[#allocation2 + $0x18] sm:$0xf]
    %v38 = vld [vmem:[#allocation2 + $0x1c] sm:$0xf]
    %v39 = vld [vmem:[#allocation2 + $0x20] sm:$0xf]
    %v40 = vld [vmem:[#allocation2 + $0x24] sm:$0xf]
    %v41 = vld [vmem:[#allocation2 + $0x28] sm:$0xf]
    %v42 = vld [vmem:[#allocation2 + $0x2c] sm:$0xf]
    %v43 = vld [vmem:[#allocation2 + $0x30] sm:$0xf]
    %v44 = vld [vmem:[#allocation2 + $0x34] sm:$0xf]
    %v45 = vld [vmem:[#allocation2 + $0x38] sm:$0xf]
    %v46 = vld [vmem:[#allocation2 + $0x3c] sm:$0xf]
    %v47 = vld [vmem:[%s2] sm:$0x1]
    %v49 = vperm.slane %v47, 0
    %v67 = vunpack.c.l.b16 %v31
    %v68 = vunpack.c.l.b16 %v32
    %v69 = vunpack.c.l.b16 %v33
    %v70 = vunpack.c.l.b16 %v34
    %v71 = vunpack.c.l.b16 %v35
    %v72 = vunpack.c.l.b16 %v36
    %v73 = vunpack.c.l.b16 %v37
    %v74 = vunpack.c.l.b16 %v38
    %v75 = vunpack.c.l.b16 %v39
    %v76 = vunpack.c.l.b16 %v40
    %v77 = vunpack.c.l.b16 %v41
    %v78 = vunpack.c.l.b16 %v42
    %v79 = vunpack.c.l.b16 %v43
    %v80 = vunpack.c.l.b16 %v44
    %v81 = vunpack.c.l.b16 %v45
    %v82 = vunpack.c.l.b16 %v46
    %v83 = vpack.c.b16 %v68, %v67
    %v84 = vpack.c.b16 %v70, %v69
    %v85 = vpack.c.b16 %v72, %v71
    %v86 = vpack.c.b16 %v74, %v73
    %v87 = vpack.c.b16 %v76, %v75
    %v88 = vpack.c.b16 %v78, %v77
    %v89 = vpack.c.b16 %v80, %v79
    %v90 = vpack.c.b16 %v82, %v81
    %99 = vmatpush.bf16.msra.mxu0 %v90
    %100 = vmatpush.bf16.msra.mxu0 %v89
    %101 = vmatpush.bf16.msra.mxu0 %v88
    %102 = vmatpush.bf16.msra.mxu0 %v87
    %103 = vmatpush.bf16.msra.mxu0 %v86
    %104 = vmatpush.bf16.msra.mxu0 %v85
    %105 = vmatpush.bf16.msra.mxu0 %v84
    %106 = vmatpush.bf16.msra.mxu0 %v83
    %107 = vmatmul.bf16.gmra.mxu0 %v30
    %v108 = vpop.f32.mrf.mxu0
    %v109 = vadd.f32 %v49, %v108
    %v110 = vpop.f32.mrf.mxu0
    %111 = vdwg.mxu0
    %v112 = vmax.f32 %v109, 0.0
    %v113 = vpack.c.bf16 %v112, %v112
    %s114 = scalar_lea.vmem [#allocation2], 64
    %v115 = vld [vmem:[%s114] sm:$0xf]
    %v116 = vld [vmem:[%s114 + $0x4] sm:$0xf]
    %v117 = vld [vmem:[%s114 + $0x8] sm:$0xf]
    %v118 = vld [vmem:[%s114 + $0xc] sm:$0xf]
    %v119 = vld [vmem:[%s114 + $0x10] sm:$0xf]
    %v120 = vld [vmem:[%s114 + $0x14] sm:$0xf]
    %v121 = vld [vmem:[%s114 + $0x18] sm:$0xf]
    %v122 = vld [vmem:[%s114 + $0x1c] sm:$0xf]
    %v123 = vld [vmem:[%s114 + $0x20] sm:$0xf]
    %v124 = vld [vmem:[%s114 + $0x24] sm:$0xf]
    %v125 = vld [vmem:[%s114 + $0x28] sm:$0xf]
    %v126 = vld [vmem:[%s114 + $0x2c] sm:$0xf]
    %v127 = vld [vmem:[%s114 + $0x30] sm:$0xf]
    %v128 = vld [vmem:[%s114 + $0x34] sm:$0xf]
    %v129 = vld [vmem:[%s114 + $0x38] sm:$0xf]
    %v130 = vld [vmem:[%s114 + $0x3c] sm:$0xf]
    %s131 = scalar_lea.vmem %s2, 1
    %v132 = vld [vmem:[%s131] sm:$0x1]
    %v134 = vperm.slane %v132, 0
    %v152 = vunpack.c.l.b16 %v115
    %v153 = vunpack.c.l.b16 %v116
    %v154 = vunpack.c.l.b16 %v117
    %v155 = vunpack.c.l.b16 %v118
    %v156 = vunpack.c.l.b16 %v119
    %v157 = vunpack.c.l.b16 %v120
    %v158 = vunpack.c.l.b16 %v121
    %v159 = vunpack.c.l.b16 %v122
    %v160 = vunpack.c.l.b16 %v123
    %v161 = vunpack.c.l.b16 %v124
    %v162 = vunpack.c.l.b16 %v125
    %v163 = vunpack.c.l.b16 %v126
    %v164 = vunpack.c.l.b16 %v127
    %v165 = vunpack.c.l.b16 %v128
    %v166 = vunpack.c.l.b16 %v129
    %v167 = vunpack.c.l.b16 %v130
    %v168 = vpack.c.b16 %v153, %v152
    %v169 = vpack.c.b16 %v155, %v154
    %v170 = vpack.c.b16 %v157, %v156
    %v171 = vpack.c.b16 %v159, %v158
    %v172 = vpack.c.b16 %v161, %v160
    %v173 = vpack.c.b16 %v163, %v162
    %v174 = vpack.c.b16 %v165, %v164
    %v175 = vpack.c.b16 %v167, %v166
    %184 = vmatpush.bf16.msra.mxu0 %v175
    %185 = vmatpush.bf16.msra.mxu0 %v174
    %186 = vmatpush.bf16.msra.mxu0 %v173
    %187 = vmatpush.bf16.msra.mxu0 %v172
    %188 = vmatpush.bf16.msra.mxu0 %v171
    %189 = vmatpush.bf16.msra.mxu0 %v170
    %190 = vmatpush.bf16.msra.mxu0 %v169
    %191 = vmatpush.bf16.msra.mxu0 %v168
    %192 = vmatmul.bf16.gmra.mxu0 %v113
    %v193 = vpop.f32.mrf.mxu0
    %v194 = vadd.f32 %v134, %v193
    %v195 = vpop.f32.mrf.mxu0
    %196 = vdwg.mxu0
    %v197 = vmax.f32 %v194, 0.0
    %v198 = vpack.c.bf16 %v197, %v197
    %s199 = scalar_lea.vmem [#allocation2], 128
    %v200 = vld [vmem:[%s199] sm:$0xf]
    %v201 = vld [vmem:[%s199 + $0x4] sm:$0xf]
    %v202 = vld [vmem:[%s199 + $0x8] sm:$0xf]
    %v203 = vld [vmem:[%s199 + $0xc] sm:$0xf]
    %v204 = vld [vmem:[%s199 + $0x10] sm:$0xf]
    %v205 = vld [vmem:[%s199 + $0x14] sm:$0xf]
    %v206 = vld [vmem:[%s199 + $0x18] sm:$0xf]
    %v207 = vld [vmem:[%s199 + $0x1c] sm:$0xf]
    %v208 = vld [vmem:[%s199 + $0x20] sm:$0xf]
    %v209 = vld [vmem:[%s199 + $0x24] sm:$0xf]
    %v210 = vld [vmem:[%s199 + $0x28] sm:$0xf]
    %v211 = vld [vmem:[%s199 + $0x2c] sm:$0xf]
    %v212 = vld [vmem:[%s199 + $0x30] sm:$0xf]
    %v213 = vld [vmem:[%s199 + $0x34] sm:$0xf]
    %v214 = vld [vmem:[%s199 + $0x38] sm:$0xf]
    %v215 = vld [vmem:[%s199 + $0x3c] sm:$0xf]
    %s216 = scalar_lea.vmem %s2, 2
    %v217 = vld [vmem:[%s216] sm:$0x1]
    %v219 = vperm.slane %v217, 0
    %v237 = vunpack.c.l.b16 %v200
    %v238 = vunpack.c.l.b16 %v201
    %v239 = vunpack.c.l.b16 %v202
    %v240 = vunpack.c.l.b16 %v203
    %v241 = vunpack.c.l.b16 %v204
    %v242 = vunpack.c.l.b16 %v205
    %v243 = vunpack.c.l.b16 %v206
    %v244 = vunpack.c.l.b16 %v207
    %v245 = vunpack.c.l.b16 %v208
    %v246 = vunpack.c.l.b16 %v209
    %v247 = vunpack.c.l.b16 %v210
    %v248 = vunpack.c.l.b16 %v211
    %v249 = vunpack.c.l.b16 %v212
    %v250 = vunpack.c.l.b16 %v213
    %v251 = vunpack.c.l.b16 %v214
    %v252 = vunpack.c.l.b16 %v215
    %v253 = vpack.c.b16 %v238, %v237
    %v254 = vpack.c.b16 %v240, %v239
    %v255 = vpack.c.b16 %v242, %v241
    %v256 = vpack.c.b16 %v244, %v243
    %v257 = vpack.c.b16 %v246, %v245
    %v258 = vpack.c.b16 %v248, %v247
    %v259 = vpack.c.b16 %v250, %v249
    %v260 = vpack.c.b16 %v252, %v251
    %269 = vmatpush.bf16.msra.mxu0 %v260
    %270 = vmatpush.bf16.msra.mxu0 %v259
    %271 = vmatpush.bf16.msra.mxu0 %v258
    %272 = vmatpush.bf16.msra.mxu0 %v257
    %273 = vmatpush.bf16.msra.mxu0 %v256
    %274 = vmatpush.bf16.msra.mxu0 %v255
    %275 = vmatpush.bf16.msra.mxu0 %v254
    %276 = vmatpush.bf16.msra.mxu0 %v253
    %277 = vmatmul.bf16.gmra.mxu0 %v198
    %v278 = vpop.f32.mrf.mxu0
    %v279 = vadd.f32 %v219, %v278
    %v280 = vpop.f32.mrf.mxu0
    %281 = vdwg.mxu0
    %v282 = vmax.f32 %v279, 0.0
    %v283 = vpack.c.bf16 %v282, %v282
    %s284 = scalar_lea.vmem [#allocation2], 192
    %v285 = vld [vmem:[%s284] sm:$0xf]
    %v286 = vld [vmem:[%s284 + $0x4] sm:$0xf]
    %v287 = vld [vmem:[%s284 + $0x8] sm:$0xf]
    %v288 = vld [vmem:[%s284 + $0xc] sm:$0xf]
    %v289 = vld [vmem:[%s284 + $0x10] sm:$0xf]
    %v290 = vld [vmem:[%s284 + $0x14] sm:$0xf]
    %v291 = vld [vmem:[%s284 + $0x18] sm:$0xf]
    %v292 = vld [vmem:[%s284 + $0x1c] sm:$0xf]
    %v293 = vld [vmem:[%s284 + $0x20] sm:$0xf]
    %v294 = vld [vmem:[%s284 + $0x24] sm:$0xf]
    %v295 = vld [vmem:[%s284 + $0x28] sm:$0xf]
    %v296 = vld [vmem:[%s284 + $0x2c] sm:$0xf]
    %v297 = vld [vmem:[%s284 + $0x30] sm:$0xf]
    %v298 = vld [vmem:[%s284 + $0x34] sm:$0xf]
    %v299 = vld [vmem:[%s284 + $0x38] sm:$0xf]
    %v300 = vld [vmem:[%s284 + $0x3c] sm:$0xf]
    %s301 = scalar_lea.vmem %s2, 3
    %v302 = vld [vmem:[%s301] sm:$0x1]
    %v304 = vperm.slane %v302, 0
    %v322 = vunpack.c.l.b16 %v285
    %v323 = vunpack.c.l.b16 %v286
    %v324 = vunpack.c.l.b16 %v287
    %v325 = vunpack.c.l.b16 %v288
    %v326 = vunpack.c.l.b16 %v289
    %v327 = vunpack.c.l.b16 %v290
    %v328 = vunpack.c.l.b16 %v291
    %v329 = vunpack.c.l.b16 %v292
    %v330 = vunpack.c.l.b16 %v293
    %v331 = vunpack.c.l.b16 %v294
    %v332 = vunpack.c.l.b16 %v295
    %v333 = vunpack.c.l.b16 %v296
    %v334 = vunpack.c.l.b16 %v297
    %v335 = vunpack.c.l.b16 %v298
    %v336 = vunpack.c.l.b16 %v299
    %v337 = vunpack.c.l.b16 %v300
    %v338 = vpack.c.b16 %v323, %v322
    %v339 = vpack.c.b16 %v325, %v324
    %v340 = vpack.c.b16 %v327, %v326
    %v341 = vpack.c.b16 %v329, %v328
    %v342 = vpack.c.b16 %v331, %v330
    %v343 = vpack.c.b16 %v333, %v332
    %v344 = vpack.c.b16 %v335, %v334
    %v345 = vpack.c.b16 %v337, %v336
    %354 = vmatpush.bf16.msra.mxu0 %v345
    %355 = vmatpush.bf16.msra.mxu0 %v344
    %356 = vmatpush.bf16.msra.mxu0 %v343
    %357 = vmatpush.bf16.msra.mxu0 %v342
    %358 = vmatpush.bf16.msra.mxu0 %v341
    %359 = vmatpush.bf16.msra.mxu0 %v340
    %360 = vmatpush.bf16.msra.mxu0 %v339
    %361 = vmatpush.bf16.msra.mxu0 %v338
    %362 = vmatmul.bf16.gmra.mxu0 %v283
    %v363 = vpop.f32.mrf.mxu0
    %v364 = vadd.f32 %v304, %v363
    %v365 = vpop.f32.mrf.mxu0
    %366 = vdwg.mxu0
    %367 = vst [vmem:[%s3] sm:$0xff] %v364
    // Predicated region
    $region18: #{pose_opt_forward.1} parent=1 // pred_check
      _
    $region19: #{pose_opt_forward.1} parent=1 // pred_check_branch
      %369 = sbr.rel (0) target = $region21
    $region20: #{pose_opt_forward.1} parent=1 // pred_region
      _
    $region21: #{pose_opt_forward.1} parent=1 // pred_fallthru
      _
    // Predicated region
    $region22: #{pose_opt_forward.1} parent=1 // pred_check
      _
    $region23: #{pose_opt_forward.1} parent=1 // pred_check_branch
      %371 = sbr.rel (0) target = $region25
    $region24: #{pose_opt_forward.1} parent=1 // pred_region
      _
    $region25: #{pose_opt_forward.1} parent=1 // pred_fallthru
      _
    %372 = vsyncpa [#allocation3], 1

// kernel: neg.8
$region0: #{neg.8}
  #allocation0 [shape = 's32[1]{0}', space=sflag, size = 0x4, scoped, tag = 'scoped memory for neg.8']
  %s0 = inlined_call_operand.vmem [shape: f32[2,24,3], index: 0, kind: input, shape index: {}]
  %s1 = inlined_call_operand.vmem [shape: f32[2,24,3], index: 1, kind: output, shape index: {}]
  %v2 = vld [vmem:[%s0] sm:$0xff]
  %3 = xla_tuple %v2
  %4 = xla_tuple %3
  %v5 = vxor.u32 %v2, 2147483648
  %6 = xla_tuple %v5
  %7 = vst [vmem:[%s1] sm:$0xff] %v5
  %s8 = scalar_lea.vmem %s0, 24
  %v9 = vld [vmem:[%s8] sm:$0xff]
  %10 = xla_tuple %v9
  %11 = xla_tuple %10
  %v12 = vxor.u32 %v9, 2147483648
  %13 = xla_tuple %v12
  %s14 = scalar_lea.vmem %s1, 24
  %15 = vst [vmem:[%s14] sm:$0xff] %v12
  %s16 = scalar_lea.vmem %s0, 8
  %v17 = vld [vmem:[%s16] sm:$0xff]
  %18 = xla_tuple %v17
  %19 = xla_tuple %18
  %v20 = vxor.u32 %v17, 2147483648
  %21 = xla_tuple %v20
  %s22 = scalar_lea.vmem %s1, 8
  %23 = vst [vmem:[%s22] sm:$0xff] %v20
  %s24 = scalar_lea.vmem %s0, 32
  %v25 = vld [vmem:[%s24] sm:$0xff]
  %26 = xla_tuple %v25
  %27 = xla_tuple %26
  %v28 = vxor.u32 %v25, 2147483648
  %29 = xla_tuple %v28
  %s30 = scalar_lea.vmem %s1, 32
  %31 = vst [vmem:[%s30] sm:$0xff] %v28
  %s32 = scalar_lea.vmem %s0, 16
  %v33 = vld [vmem:[%s32] sm:$0xff]
  %34 = xla_tuple %v33
  %35 = xla_tuple %34
  %v36 = vxor.u32 %v33, 2147483648
  %37 = xla_tuple %v36
  %s38 = scalar_lea.vmem %s1, 16
  %39 = vst [vmem:[%s38] sm:$0xff] %v36
  %s40 = scalar_lea.vmem %s0, 40
  %v41 = vld [vmem:[%s40] sm:$0xff]
  %42 = xla_tuple %v41
  %43 = xla_tuple %42
  %v44 = vxor.u32 %v41, 2147483648
  %45 = xla_tuple %v44
  %s46 = scalar_lea.vmem %s1, 40
  %47 = vst [vmem:[%s46] sm:$0xff] %v44

</llo_original>
